<compile_context>
chip_gen: v7x
topology: tpu7x:2x2x1
jax: 0.10.0
libtpu: 0.0.40
codegen_flags: <defaults>
</compile_context>

<pallas_src>
import functools

import jax
import jax.numpy as jnp
from jax.experimental import pallas as pl
from jax.experimental.pallas import tpu as pltpu

KEY_OUTPUT = "metric_depth"

_LANE = 128
_SUBLANE_ALIGN = 32        # covers the int8 native (32, 128) tile
_MAX_BLOCK_ROWS = 2048     # 2048*128 pixels per grid step


def _extract_key(prediction, key):
    if isinstance(prediction, dict):
        return prediction[key]
    return prediction


def _silog_partial_kernel(p_ref, t_ref, m_ref, out_ref, *, alpha):
    """One (block_rows, 128) chunk -> SMEM partial [count, sum g, sum g^2]."""
    valid = m_ref[...] != 0                              # (R, 128) bool
    p = p_ref[...].astype(jnp.float32)
    t = t_ref[...].astype(jnp.float32)
    # Sanitize unmasked / padded elements so log() stays finite.
    g = jnp.log(jnp.where(valid, p, 1.0) + alpha) \
        - jnp.log(jnp.where(valid, t, 1.0) + alpha)
    g = jnp.where(valid, g, 0.0)
    mf = valid.astype(jnp.float32)

    # Lane-axis reductions first, then one small cross-sublane reduce.
    cnt = jnp.sum(mf, axis=-1, keepdims=True)            # (R, 1)
    s1 = jnp.sum(g, axis=-1, keepdims=True)
    s2 = jnp.sum(g * g, axis=-1, keepdims=True)

    out_ref[0, 0] = jnp.sum(cnt)
    out_ref[0, 1] = jnp.sum(s1)
    out_ref[0, 2] = jnp.sum(s2)


def silog_loss(input, target, mask=None, *, beta=0.15, interpolate=True,
               return_interpolated=False, bexlude_top20=False):
    """SILogLoss.forward. input/target: (B, 1, H, W); mask: bool, same shape."""
    pred = _extract_key(input, KEY_OUTPUT)
    if pred.shape[-1] != target.shape[-1] and interpolate:
        # TODO(synk): bilinear align_corners resize of `pred` to target's
        # spatial size is plain-JAX glue, not a Pallas kernel; not needed for
        # matching-shape inputs.
        raise NotImplementedError("interpolate path not implemented")
    if target.ndim == 3:
        target = target[:, None]
    if pred.ndim == 3:
        pred = pred[:, None]
    if bexlude_top20:
        # TODO(synk): top-20% exclusion needs a per-image sort/threshold; no
        # clean Pallas equivalent and the module defaults to False.
        raise NotImplementedError("bexlude_top20 path not implemented")
    if mask is None:
        mask = jnp.ones(pred.shape, dtype=jnp.bool_)
    if mask.ndim == 3:
        mask = mask[:, None]
    mask = jnp.broadcast_to(mask, pred.shape)
    assert pred.shape == target.shape, (pred.shape, target.shape)

    alpha = 1e-7

    # Flatten everything (torch boolean-indexes across the whole batch) and
    # pad to a lane-dense (rows, 128) layout.  NOTE: native dtypes kept.
    p = pred.reshape(-1)
    t = target.reshape(-1)
    m = mask.reshape(-1).astype(jnp.int8)                # 1 B/pixel mask

    n = p.shape[0]
    rows = -(-n // _LANE)
    rows = -(-rows // _SUBLANE_ALIGN) * _SUBLANE_ALIGN
    block_rows = min(rows, _MAX_BLOCK_ROWS)
    grid = -(-rows // block_rows)
    rows_pad = grid * block_rows
    pad = rows_pad * _LANE - n

    p = jnp.pad(p, (0, pad), constant_values=1).reshape(rows_pad, _LANE)
    t = jnp.pad(t, (0, pad), constant_values=1).reshape(rows_pad, _LANE)
    m = jnp.pad(m, (0, pad), constant_values=0).reshape(rows_pad, _LANE)

    partials = pl.pallas_call(
        functools.partial(_silog_partial_kernel, alpha=alpha),
        out_shape=jax.ShapeDtypeStruct((grid, 3), jnp.float32),
        grid=(grid,),
        in_specs=[
            pl.BlockSpec((block_rows, _LANE), lambda g: (g, 0)),
            pl.BlockSpec((block_rows, _LANE), lambda g: (g, 0)),
            pl.BlockSpec((block_rows, _LANE), lambda g: (g, 0)),
        ],
        out_specs=pl.BlockSpec((1, 3), lambda g: (g, 0),
                               memory_space=pltpu.SMEM),
        compiler_params=pltpu.CompilerParams(
            dimension_semantics=("parallel",),
            vmem_limit_bytes=32 * 1024 * 1024),
    )(p, t, m)

    cnt = jnp.sum(partials[:, 0])
    s1 = jnp.sum(partials[:, 1])
    s2 = jnp.sum(partials[:, 2])
    mean_g = s1 / cnt
    var_g = (s2 - s1 * mean_g) / (cnt - 1.0)   # torch.var default: unbiased
    dg = var_g + beta * mean_g * mean_g
    loss = 10.0 * jnp.sqrt(dg)

    if not return_interpolated:
        return loss
    return loss, pred


def _silog_ref(input, target, mask=None, beta=0.15):
    """Pure-JAX reference mirroring the PyTorch semantics."""
    p = jnp.asarray(_extract_key(input, KEY_OUTPUT), jnp.float32)
    t = jnp.asarray(target, jnp.float32)
    if t.ndim == 3:
        t = t[:, None]
    if mask is not None:
        m = jnp.broadcast_to(jnp.asarray(mask, bool), p.shape)
        p = p[m]
        t = t[m]
    else:
        p = p.reshape(-1)
        t = t.reshape(-1)
    alpha = 1e-7
    g = jnp.log(p + alpha) - jnp.log(t + alpha)
    dg = jnp.var(g, ddof=1) + beta * jnp.mean(g) ** 2
    return 10.0 * jnp.sqrt(dg)


if __name__ == "__main__":
    key = jax.random.PRNGKey(0)
    k1, k2, k3 = jax.random.split(key, 3)

    B, C, H, W = 2, 1, 16, 16
    prediction = jax.random.uniform(k1, (B, C, H, W), jnp.float32, 0.1, 2.0)
    target = 1.5 * prediction + 0.3 + 0.05 * jax.random.normal(
        k2, (B, C, H, W), jnp.float32)
    mask = jax.random.uniform(k3, (B, C, H, W)) > 0.3

    loss = silog_loss(prediction, target, mask)
    jax.block_until_ready(loss)

    ref = _silog_ref(prediction, target, mask)
    assert jnp.allclose(loss, ref, rtol=1e-4, atol=1e-5), (loss, ref)

    print("KERNEL_OK")
</pallas_src>

<mosaic_0001>
module attributes {stable_mosaic.version = 11 : i64} {
  func.func @_silog_partial_kernel(%arg0: i32, %arg1: memref<32x128xf32, #tpu.memory_space<vmem>>, %arg2: memref<32x128xf32, #tpu.memory_space<vmem>>, %arg3: memref<32x128xi8, #tpu.memory_space<vmem>>, %arg4: memref<1x3xf32, #tpu.memory_space<smem>>) attributes {dimension_semantics = [#tpu.dimension_semantics<parallel>], iteration_bounds = array<i64: 1>, scalar_prefetch = 0 : i64, scratch_operands = 0 : i64, tpu.core_type = #tpu.core_type<tc>, window_params = [{transform_indices = @transform_0, window_bounds = array<i64: 32, 128>}, {transform_indices = @transform_1, window_bounds = array<i64: 32, 128>}, {transform_indices = @transform_2, window_bounds = array<i64: 32, 128>}, {transform_indices = @transform_3, window_bounds = array<i64: 1, 3>}]} {
    %c0 = arith.constant 0 : index
    %c0_0 = arith.constant 0 : index
    %0 = vector.load %arg3[%c0, %c0_0] : memref<32x128xi8, #tpu.memory_space<vmem>>, vector<32x128xi8>
    %c0_i8 = arith.constant 0 : i8
    %1 = vector.broadcast %c0_i8 : i8 to vector<32x128xi8>
    %2 = arith.cmpi ne, %0, %1 : vector<32x128xi8>
    %c0_1 = arith.constant 0 : index
    %c0_2 = arith.constant 0 : index
    %3 = vector.load %arg1[%c0_1, %c0_2] : memref<32x128xf32, #tpu.memory_space<vmem>>, vector<32x128xf32>
    %c0_3 = arith.constant 0 : index
    %c0_4 = arith.constant 0 : index
    %4 = vector.load %arg2[%c0_3, %c0_4] : memref<32x128xf32, #tpu.memory_space<vmem>>, vector<32x128xf32>
    %cst = arith.constant 1.000000e+00 : f32
    %5 = vector.broadcast %cst : f32 to vector<32x128xf32>
    %6 = arith.select %2, %3, %5 : vector<32x128xi1>, vector<32x128xf32>
    %cst_5 = arith.constant 1.000000e-07 : f32
    %7 = vector.broadcast %cst_5 : f32 to vector<32x128xf32>
    %8 = arith.addf %6, %7 : vector<32x128xf32>
    %9 = math.log %8 : vector<32x128xf32>
    %cst_6 = arith.constant 1.000000e+00 : f32
    %10 = vector.broadcast %cst_6 : f32 to vector<32x128xf32>
    %11 = arith.select %2, %4, %10 : vector<32x128xi1>, vector<32x128xf32>
    %cst_7 = arith.constant 1.000000e-07 : f32
    %12 = vector.broadcast %cst_7 : f32 to vector<32x128xf32>
    %13 = arith.addf %11, %12 : vector<32x128xf32>
    %14 = math.log %13 : vector<32x128xf32>
    %15 = arith.subf %9, %14 : vector<32x128xf32>
    %cst_8 = arith.constant 0.000000e+00 : f32
    %16 = vector.broadcast %cst_8 : f32 to vector<32x128xf32>
    %17 = arith.select %2, %15, %16 : vector<32x128xi1>, vector<32x128xf32>
    %18 = arith.extui %2 : vector<32x128xi1> to vector<32x128xi32>
    %19 = arith.sitofp %18 : vector<32x128xi32> to vector<32x128xf32>
    %cst_9 = arith.constant dense<0.000000e+00> : vector<32xf32>
    %20 = vector.multi_reduction <add>, %19, %cst_9 [1] : vector<32x128xf32> to vector<32xf32>
    %21 = vector.shape_cast %20 : vector<32xf32> to vector<32x1xf32>
    %cst_10 = arith.constant dense<0.000000e+00> : vector<32xf32>
    %22 = vector.multi_reduction <add>, %17, %cst_10 [1] : vector<32x128xf32> to vector<32xf32>
    %23 = vector.shape_cast %22 : vector<32xf32> to vector<32x1xf32>
    %24 = arith.mulf %17, %17 : vector<32x128xf32>
    %cst_11 = arith.constant dense<0.000000e+00> : vector<32xf32>
    %25 = vector.multi_reduction <add>, %24, %cst_11 [1] : vector<32x128xf32> to vector<32xf32>
    %26 = vector.shape_cast %25 : vector<32xf32> to vector<32x1xf32>
    %27 = vector.shape_cast %21 : vector<32x1xf32> to vector<1x32x1xf32>
    %cst_12 = arith.constant dense<0.000000e+00> : vector<1xf32>
    %28 = vector.multi_reduction <add>, %27, %cst_12 [1, 2] : vector<1x32x1xf32> to vector<1xf32>
    %29 = vector.shape_cast %28 : vector<1xf32> to vector<1x1x1xf32>
    %30 = vector.extract %29[0, 0, 0] : f32 from vector<1x1x1xf32>
    %c0_13 = arith.constant 0 : index
    %c0_14 = arith.constant 0 : index
    %31 = memref.load %arg4[%c0_13, %c0_14] : memref<1x3xf32, #tpu.memory_space<smem>>
    memref.store %30, %arg4[%c0_13, %c0_14] : memref<1x3xf32, #tpu.memory_space<smem>>
    %32 = vector.shape_cast %23 : vector<32x1xf32> to vector<1x32x1xf32>
    %cst_15 = arith.constant dense<0.000000e+00> : vector<1xf32>
    %33 = vector.multi_reduction <add>, %32, %cst_15 [1, 2] : vector<1x32x1xf32> to vector<1xf32>
    %34 = vector.shape_cast %33 : vector<1xf32> to vector<1x1x1xf32>
    %35 = vector.extract %34[0, 0, 0] : f32 from vector<1x1x1xf32>
    %c0_16 = arith.constant 0 : index
    %c1 = arith.constant 1 : index
    %36 = memref.load %arg4[%c0_16, %c1] : memref<1x3xf32, #tpu.memory_space<smem>>
    memref.store %35, %arg4[%c0_16, %c1] : memref<1x3xf32, #tpu.memory_space<smem>>
    %37 = vector.shape_cast %26 : vector<32x1xf32> to vector<1x32x1xf32>
    %cst_17 = arith.constant dense<0.000000e+00> : vector<1xf32>
    %38 = vector.multi_reduction <add>, %37, %cst_17 [1, 2] : vector<1x32x1xf32> to vector<1xf32>
    %39 = vector.shape_cast %38 : vector<1xf32> to vector<1x1x1xf32>
    %40 = vector.extract %39[0, 0, 0] : f32 from vector<1x1x1xf32>
    %c0_18 = arith.constant 0 : index
    %c2 = arith.constant 2 : index
    %41 = memref.load %arg4[%c0_18, %c2] : memref<1x3xf32, #tpu.memory_space<smem>>
    memref.store %40, %arg4[%c0_18, %c2] : memref<1x3xf32, #tpu.memory_space<smem>>
    return
  }
  func.func @transform_0(%arg0: i32) -> (i32, i32) {
    %c0_i32 = arith.constant 0 : i32
    %c0_i32_0 = arith.constant 0 : i32
    return %arg0, %c0_i32 : i32, i32
  }
  func.func @transform_1(%arg0: i32) -> (i32, i32) {
    %c0_i32 = arith.constant 0 : i32
    %c0_i32_0 = arith.constant 0 : i32
    return %arg0, %c0_i32 : i32, i32
  }
  func.func @transform_2(%arg0: i32) -> (i32, i32) {
    %c0_i32 = arith.constant 0 : i32
    %c0_i32_0 = arith.constant 0 : i32
    return %arg0, %c0_i32 : i32, i32
  }
  func.func @transform_3(%arg0: i32) -> (i32, i32) {
    %c0_i32 = arith.constant 0 : i32
    %c0_i32_0 = arith.constant 0 : i32
    return %arg0, %c0_i32 : i32, i32
  }
}

</mosaic_0001>

<llo_original>
// kernel: tpu_custom_call.1
$region0: #{tpu_custom_call.1}
  #allocation0 [shape = 'u32[]', space=smem, size = 0x4, offset = 0x4, fixed_abs, tag = 'smem constant byte address 0x4 - core index']
  #allocation1 [shape = 'u32[144,128]{1,0:T(1,128)}', space=vmem, size = 0x12000, scoped, tag = 'internal scratch']
  %s0 = inlined_call_operand.hbm [shape: f32[32,128], index: 0, kind: input, shape index: {}]
  %s1 = inlined_call_operand.hbm [shape: f32[32,128], index: 1, kind: input, shape index: {}]
  %s2 = inlined_call_operand.hbm [shape: s8[32,128], index: 2, kind: input, shape index: {}]
  %s3 = inlined_call_operand.hbm [shape: f32[1,3], index: 3, kind: output, shape index: {}]
  %s4 = sld [smem:[#allocation0]]
  $region34: #{tpu_custom_call.1} parent=0
    _
  %s6 = ssub.s32 1, %s4
  %s7 = scalar_select 0, %s6, %s4
  $region1: #{tpu_custom_call.1} parent=0
    #allocation2 [shape = 'u8[16384]{0}', space=vmem, size = 0x4000, scoped, tag = 'input window, operand 0, single buffered']
    #allocation3 [shape = 's32[1]{0}', space=sflag, size = 0x4, scoped, tag = 'scoped memory for tpu_custom_call.1']
    #allocation4 [shape = 's32[1]{0}', space=sflag, size = 0x4, scoped, tag = 'scoped memory for tpu_custom_call.1']
    #allocation5 [shape = 'u8[16384]{0}', space=vmem, size = 0x4000, scoped, tag = 'input window, operand 1, single buffered']
    #allocation6 [shape = 's32[1]{0}', space=sflag, size = 0x4, scoped, tag = 'scoped memory for tpu_custom_call.1']
    #allocation7 [shape = 'u8[4096]{0}', space=vmem, size = 0x1000, scoped, tag = 'input window, operand 2, single buffered']
    #allocation8 [shape = 'u8[512]{0}', space=smem, size = 0x200, scoped, tag = 'output window, operand 0, single buffered']
    %8 = vsyncpa [#allocation3], 0
    %9 = vsyncpa [#allocation6], 0
    %10 = vsyncpa [#allocation4], 0
    // Predicated region
    $region2: #{tpu_custom_call.1} parent=1 // pred_check
      _
    $region3: #{tpu_custom_call.1} parent=1 // pred_check_branch
      %12 = sbr.rel (0) target = $region5
    $region4: #{tpu_custom_call.1} parent=1 // pred_region
      %s14 = ssub.s32 512, 512
      %15 = vsyncadd [#allocation3], %s14
      %s16 = sshll.u32 [#allocation2], 4
      %s17 = int_to_ptr.vmem [resolvable:$true] %s16
      %22 = dma.hbm_to_vmem [thread:$0]  %s0, 512, %s17, [#allocation3], 128, 128, 8
    $region5: #{tpu_custom_call.1} parent=1 // pred_fallthru
      _
    // Predicated region
    $region6: #{tpu_custom_call.1} parent=1 // pred_check
      _
    $region7: #{tpu_custom_call.1} parent=1 // pred_check_branch
      %24 = sbr.rel (0) target = $region9
    $region8: #{tpu_custom_call.1} parent=1 // pred_region
      %s26 = ssub.s32 512, 512
      %27 = vsyncadd [#allocation6], %s26
      %s28 = sshll.u32 [#allocation5], 4
      %s29 = int_to_ptr.vmem [resolvable:$true] %s28
      %34 = dma.hbm_to_vmem [thread:$0]  %s1, 512, %s29, [#allocation6], 128, 128, 8
    $region9: #{tpu_custom_call.1} parent=1 // pred_fallthru
      _
    // Predicated region
    $region10: #{tpu_custom_call.1} parent=1 // pred_check
      _
    $region11: #{tpu_custom_call.1} parent=1 // pred_check_branch
      %36 = sbr.rel (0) target = $region13
    $region12: #{tpu_custom_call.1} parent=1 // pred_region
      %s38 = ssub.s32 128, 128
      %39 = vsyncadd [#allocation6], %s38
      %s41 = sshll.u32 [#allocation7], 4
      %s42 = int_to_ptr.vmem [resolvable:$true] %s41
      %44 = dma.hbm_to_vmem [thread:$0]  %s2, 128, %s42, [#allocation6]
    $region13: #{tpu_custom_call.1} parent=1 // pred_fallthru
      _
    // Predicated region
    $region14: #{tpu_custom_call.1} parent=1 // pred_check
      _
    $region15: #{tpu_custom_call.1} parent=1 // pred_check_branch
      %46 = sbr.rel (0) target = $region17
    $region16: #{tpu_custom_call.1} parent=1 // pred_region
      %47 = dma.done [#allocation3], 512
    $region17: #{tpu_custom_call.1} parent=1 // pred_fallthru
      _
    // Predicated region
    $region18: #{tpu_custom_call.1} parent=1 // pred_check
      _
    $region19: #{tpu_custom_call.1} parent=1 // pred_check_branch
      %49 = sbr.rel (0) target = $region21
    $region20: #{tpu_custom_call.1} parent=1 // pred_region
      %50 = dma.done [#allocation6], 512
    $region21: #{tpu_custom_call.1} parent=1 // pred_fallthru
      _
    // Predicated region
    $region22: #{tpu_custom_call.1} parent=1 // pred_check
      _
    $region23: #{tpu_custom_call.1} parent=1 // pred_check_branch
      %52 = sbr.rel (0) target = $region25
    $region24: #{tpu_custom_call.1} parent=1 // pred_region
      %53 = dma.done [#allocation6], 128
    $region25: #{tpu_custom_call.1} parent=1 // pred_fallthru
      _
    %v56 = vld [vmem:[#allocation7] sm:$0xff]
    %vm57 = vnez %v56
    %v58 = vld [vmem:[#allocation2] sm:$0xff]
    %v59 = vld [vmem:[#allocation2 + $0x8] sm:$0xff]
    %v60 = vld [vmem:[#allocation2 + $0x10] sm:$0xff]
    %v61 = vld [vmem:[#allocation2 + $0x18] sm:$0xff]
    %v62 = vld [vmem:[#allocation5] sm:$0xff]
    %v63 = vld [vmem:[#allocation5 + $0x8] sm:$0xff]
    %v64 = vld [vmem:[#allocation5 + $0x10] sm:$0xff]
    %v65 = vld [vmem:[#allocation5 + $0x18] sm:$0xff]
    %v66 = vsel %vm57, 16843009, 0
    %v67 = vunpack.c.0.s8 %v66
    %v68 = vunpack.c.1.s8 %v66
    %v69 = vunpack.c.2.s8 %v66
    %v70 = vunpack.c.3.s8 %v66
    %v71 = vpack.c.b16 %v67, %v67
    %v72 = vpack.c.b8 %v71, %v71
    %v73 = vpack.c.b16 %v68, %v68
    %v74 = vpack.c.b8 %v73, %v73
    %v75 = vpack.c.b16 %v69, %v69
    %v76 = vpack.c.b8 %v75, %v75
    %v77 = vpack.c.b16 %v70, %v70
    %v78 = vpack.c.b8 %v77, %v77
    %vm79 = vnez %v72
    %vm80 = vnez %v74
    %vm81 = vnez %v76
    %vm82 = vnez %v78
    %v83 = vsel %vm79, 16843009, 0
    %v84 = vsel %vm80, 16843009, 0
    %v85 = vsel %vm81, 16843009, 0
    %v86 = vsel %vm82, 16843009, 0
    %v87 = vunpack.c.0.s8 %v83
    %v88 = vunpack.c.0.s8 %v84
    %v89 = vunpack.c.0.s8 %v85
    %v90 = vunpack.c.0.s8 %v86
    %vm91 = vcmp.ne.s32.totalorder %v87, 0
    %vm92 = vcmp.ne.s32.totalorder %v88, 0
    %vm93 = vcmp.ne.s32.totalorder %v89, 0
    %vm94 = vcmp.ne.s32.totalorder %v90, 0
    %v95 = vsel %vm91, %v58, 1.0
    %v96 = vsel %vm92, %v59, 1.0
    %v97 = vsel %vm93, %v60, 1.0
    %v98 = vsel %vm94, %v61, 1.0
    %v99 = vadd.f32 %v95, 1e-07
    %v100 = vadd.f32 %v96, 1e-07
    %v101 = vadd.f32 %v97, 1e-07
    %v102 = vadd.f32 %v98, 1e-07
    %v103 = vlog2.pop %v99
    %v104 = vmul.f32 %v103, 0.6931472
    %v105 = vlog2.pop %v100
    %v106 = vmul.f32 %v105, 0.6931472
    %v107 = vlog2.pop %v101
    %v108 = vmul.f32 %v107, 0.6931472
    %v109 = vlog2.pop %v102
    %v110 = vmul.f32 %v109, 0.6931472
    %v111 = vsel %vm91, %v62, 1.0
    %v112 = vsel %vm92, %v63, 1.0
    %v113 = vsel %vm93, %v64, 1.0
    %v114 = vsel %vm94, %v65, 1.0
    %v115 = vadd.f32 %v111, 1e-07
    %v116 = vadd.f32 %v112, 1e-07
    %v117 = vadd.f32 %v113, 1e-07
    %v118 = vadd.f32 %v114, 1e-07
    %v119 = vlog2.pop %v115
    %v120 = vmul.f32 %v119, 0.6931472
    %v121 = vlog2.pop %v116
    %v122 = vmul.f32 %v121, 0.6931472
    %v123 = vlog2.pop %v117
    %v124 = vmul.f32 %v123, 0.6931472
    %v125 = vlog2.pop %v118
    %v126 = vmul.f32 %v125, 0.6931472
    %v127 = vsub.f32 %v104, %v120
    %v128 = vsub.f32 %v106, %v122
    %v129 = vsub.f32 %v108, %v124
    %v130 = vsub.f32 %v110, %v126
    %v131 = vsel %vm91, %v127, 0.0
    %v132 = vsel %vm92, %v128, 0.0
    %v133 = vsel %vm93, %v129, 0.0
    %v134 = vsel %vm94, %v130, 0.0
    %v135 = vsel %vm91, 1, 0
    %v136 = vsel %vm92, 1, 0
    %v137 = vsel %vm93, 1, 0
    %v138 = vsel %vm94, 1, 0
    %v139 = vcvt.s32.f32 %v135
    %v140 = vcvt.s32.f32 %v136
    %v141 = vcvt.s32.f32 %v137
    %v142 = vcvt.s32.f32 %v138
    %143 = vadd.xlane.f32.xlu0 %v139
    %v144 = vpop.xlane.xlu0 %143
    %145 = vadd.xlane.f32.xlu0 %v140
    %v146 = vpop.xlane.xlu0 %145
    %147 = vadd.xlane.f32.xlu0 %v141
    %v148 = vpop.xlane.xlu0 %147
    %149 = vadd.xlane.f32.xlu0 %v142
    %v150 = vpop.xlane.xlu0 %149
    %151 = vadd.xlane.f32.xlu0 %v131
    %v152 = vpop.xlane.xlu0 %151
    %153 = vadd.xlane.f32.xlu0 %v132
    %v154 = vpop.xlane.xlu0 %153
    %155 = vadd.xlane.f32.xlu0 %v133
    %v156 = vpop.xlane.xlu0 %155
    %157 = vadd.xlane.f32.xlu0 %v134
    %v158 = vpop.xlane.xlu0 %157
    %v159 = vmul.f32 %v131, %v131
    %v160 = vmul.f32 %v132, %v132
    %v161 = vmul.f32 %v133, %v133
    %v162 = vmul.f32 %v134, %v134
    %163 = vadd.xlane.f32.xlu0 %v159
    %v164 = vpop.xlane.xlu0 %163
    %165 = vadd.xlane.f32.xlu0 %v160
    %v166 = vpop.xlane.xlu0 %165
    %167 = vadd.xlane.f32.xlu0 %v161
    %v168 = vpop.xlane.xlu0 %167
    %169 = vadd.xlane.f32.xlu0 %v162
    %v170 = vpop.xlane.xlu0 %169
    %vm171 = vcmask 7168
    %v172 = vsel %vm171, %v144, 0.0
    %v173 = vsel %vm171, %v146, 0.0
    %v174 = vadd.f32 %v172, %v173
    %v175 = vsel %vm171, %v148, 0.0
    %v176 = vadd.f32 %v174, %v175
    %v177 = vsel %vm171, %v150, 0.0
    %v178 = vadd.f32 %v176, %v177
    %179 = vadd.xlane.f32.xlu0 %v178
    %v180 = vpop.xlane.xlu0 %179
    %v181 = vrot.slane %v180, 4
    %v182 = vadd.f32 %v180, %v181
    %v183 = vrot.slane %v182, 2
    %v184 = vadd.f32 %v182, %v183
    %v185 = vrot.slane %v184, 1
    %v186 = vadd.f32 %v184, %v185
    %s187 = vtos %v186
    %s188 = scalar_lea.smem [#allocation8], 0
    %189 = sst [smem:[%s188]] %s187
    %v190 = vsel %vm171, %v152, 0.0
    %v191 = vsel %vm171, %v154, 0.0
    %v192 = vadd.f32 %v190, %v191
    %v193 = vsel %vm171, %v156, 0.0
    %v194 = vadd.f32 %v192, %v193
    %v195 = vsel %vm171, %v158, 0.0
    %v196 = vadd.f32 %v194, %v195
    %197 = vadd.xlane.f32.xlu0 %v196
    %v198 = vpop.xlane.xlu0 %197
    %v199 = vrot.slane %v198, 4
    %v200 = vadd.f32 %v198, %v199
    %v201 = vrot.slane %v200, 2
    %v202 = vadd.f32 %v200, %v201
    %v203 = vrot.slane %v202, 1
    %v204 = vadd.f32 %v202, %v203
    %s205 = vtos %v204
    %s206 = scalar_lea.smem [#allocation8], 1
    %207 = sst [smem:[%s206]] %s205
    %v208 = vsel %vm171, %v164, 0.0
    %v209 = vsel %vm171, %v166, 0.0
    %v210 = vadd.f32 %v208, %v209
    %v211 = vsel %vm171, %v168, 0.0
    %v212 = vadd.f32 %v210, %v211
    %v213 = vsel %vm171, %v170, 0.0
    %v214 = vadd.f32 %v212, %v213
    %215 = vadd.xlane.f32.xlu0 %v214
    %v216 = vpop.xlane.xlu0 %215
    %v217 = vrot.slane %v216, 4
    %v218 = vadd.f32 %v216, %v217
    %v219 = vrot.slane %v218, 2
    %v220 = vadd.f32 %v218, %v219
    %v221 = vrot.slane %v220, 1
    %v222 = vadd.f32 %v220, %v221
    %s223 = vtos %v222
    %s224 = scalar_lea.smem [#allocation8], 2
    %225 = sst [smem:[%s224]] %s223
    // Predicated region
    $region26: #{tpu_custom_call.1} parent=1 // pred_check
      _
    $region27: #{tpu_custom_call.1} parent=1 // pred_check_branch
      %227 = sbr.rel (0) target = $region29
    $region28: #{tpu_custom_call.1} parent=1 // pred_region
      %s229 = ssub.s32 16, 16
      %230 = vsyncadd [#allocation4], %s229
      %233 = dma.smem_to_hbm [#allocation8], 16, %s3, [#allocation4]
    $region29: #{tpu_custom_call.1} parent=1 // pred_fallthru
      _
    // Predicated region
    $region30: #{tpu_custom_call.1} parent=1 // pred_check
      _
    $region31: #{tpu_custom_call.1} parent=1 // pred_check_branch
      %235 = sbr.rel (0) target = $region33
    $region32: #{tpu_custom_call.1} parent=1 // pred_region
      %236 = dma.done [#allocation4], 16
    $region33: #{tpu_custom_call.1} parent=1 // pred_fallthru
      _
    %237 = sfence
    %238 = vsyncpa [#allocation3], 1
    %239 = vsyncpa [#allocation6], 1
    %240 = vsyncpa [#allocation4], 1

</llo_original>
